<compile_context>
chip_gen: v7x
topology: tpu7x:2x2x1
jax: 0.10.0
libtpu: 0.0.40
codegen_flags: <defaults>
</compile_context>

<pallas_src>
import functools

import jax
import jax.numpy as jnp
from jax.experimental import pallas as pl
from jax.experimental.pallas import tpu as pltpu

N_ACTIONS = 2
N_FEATURE = 8                       # fetch_california_housing().data has 8 features
N_STATES = 480 + N_FEATURE          # 488
HIDDEN = 100

# TPU-friendly padded sizes (lane dims -> multiples of 128).
PAD_IN = 512        # 488 -> 512 (K dim of fc1)
PAD_HID = 128       # 100 -> 128
PAD_OUT = 128       # 2   -> 128
MAX_TB = 512        # batch tile


def _round_up(n, m):
    return ((n + m - 1) // m) * m


def _mlp_kernel(x_ref, w1_ref, b1_ref, w2_ref, b2_ref, o_ref, xpad_ref):
    """One batch tile: pad K in VMEM, fc1 (bf16 MXU) -> relu -> out (bf16 MXU)."""
    # Zero-extend the feature axis 488 -> 512 inside VMEM (padded weight rows
    # are zero, but the scratch must be zeroed so stale VMEM can't leak NaNs).
    xpad_ref[...] = jnp.zeros_like(xpad_ref)
    xpad_ref[:, :N_STATES] = x_ref[...]

    xb = xpad_ref[...].astype(jnp.bfloat16)                       # (TB, 512)
    h = jnp.dot(xb, w1_ref[...], preferred_element_type=jnp.float32)
    h = jnp.maximum(h + b1_ref[...], 0.0)                         # (TB, 128) f32

    o = jnp.dot(h.astype(jnp.bfloat16), w2_ref[...],
                preferred_element_type=jnp.float32)
    o_ref[...] = o + b2_ref[...]                                  # (TB, 128) f32


def prepare_params(w1, b1, w2, b2):
    """One-time prep: PyTorch-layout params -> padded, transposed, bf16 weights.

    w1: (HIDDEN, N_STATES), b1: (HIDDEN,), w2: (N_ACTIONS, HIDDEN), b2: (N_ACTIONS,)
    """
    w1p = jnp.zeros((PAD_IN, PAD_HID), jnp.bfloat16)
    w1p = w1p.at[:N_STATES, :HIDDEN].set(w1.T.astype(jnp.bfloat16))
    b1p = jnp.zeros((1, PAD_HID), jnp.float32).at[0, :HIDDEN].set(b1)
    w2p = jnp.zeros((PAD_HID, PAD_OUT), jnp.bfloat16)
    w2p = w2p.at[:HIDDEN, :N_ACTIONS].set(w2.T.astype(jnp.bfloat16))
    b2p = jnp.zeros((1, PAD_OUT), jnp.float32).at[0, :N_ACTIONS].set(b2)
    return w1p, b1p, w2p, b2p


@jax.jit
def net_forward(x, w1p, b1p, w2p, b2p):
    """Pallas forward for Net.  x: (B, N_STATES) f32 -> (B, N_ACTIONS) f32."""
    B = x.shape[0]
    Bp = _round_up(B, 8)
    if Bp <= MAX_TB:
        TB = Bp
    else:
        TB = MAX_TB
        Bp = _round_up(Bp, TB)
    if Bp != B:
        x = jnp.pad(x, ((0, Bp - B), (0, 0)))      # batch-dim padding only

    grid = (Bp // TB,)

    out_p = pl.pallas_call(
        _mlp_kernel,
        out_shape=jax.ShapeDtypeStruct((Bp, PAD_OUT), jnp.float32),
        grid_spec=pltpu.PrefetchScalarGridSpec(
            num_scalar_prefetch=0,
            grid=grid,
            in_specs=[
                # x block: last dim equals the full array dim (488) -> exempt
                # from the 128-divisibility rule; batch tile TB is 8-aligned.
                pl.BlockSpec((TB, N_STATES), lambda i: (i, 0)),
                pl.BlockSpec((PAD_IN, PAD_HID), lambda i: (0, 0)),   # resident
                pl.BlockSpec((1, PAD_HID), lambda i: (0, 0)),        # resident
                pl.BlockSpec((PAD_HID, PAD_OUT), lambda i: (0, 0)),  # resident
                pl.BlockSpec((1, PAD_OUT), lambda i: (0, 0)),        # resident
            ],
            out_specs=pl.BlockSpec((TB, PAD_OUT), lambda i: (i, 0)),
            scratch_shapes=[pltpu.VMEM((TB, PAD_IN), jnp.float32)],
        ),
        compiler_params=pltpu.CompilerParams(
            dimension_semantics=("parallel",),
        ),
        cost_estimate=pl.CostEstimate(
            flops=2 * Bp * (PAD_IN * PAD_HID + PAD_HID * PAD_OUT),
            transcendentals=0,
            bytes_accessed=(Bp * N_STATES * 4          # x in
                            + PAD_IN * PAD_HID * 2     # w1 (bf16)
                            + PAD_HID * PAD_OUT * 2    # w2 (bf16)
                            + Bp * PAD_OUT * 4),       # out
        ),
    )(x, w1p, b1p, w2p, b2p)

    return out_p[:B, :N_ACTIONS]


def init_params(key):
    """Matches the PyTorch module's shapes; weights ~ N(0, 0.1)."""
    k1, k2, k3, k4 = jax.random.split(key, 4)
    w1 = 0.1 * jax.random.normal(k1, (HIDDEN, N_STATES), jnp.float32)
    b1 = jax.random.uniform(
        k2, (HIDDEN,), jnp.float32,
        minval=-1.0 / jnp.sqrt(N_STATES), maxval=1.0 / jnp.sqrt(N_STATES))
    w2 = 0.1 * jax.random.normal(k3, (N_ACTIONS, HIDDEN), jnp.float32)
    b2 = jax.random.uniform(
        k4, (N_ACTIONS,), jnp.float32,
        minval=-1.0 / jnp.sqrt(HIDDEN), maxval=1.0 / jnp.sqrt(HIDDEN))
    return w1, b1, w2, b2


def _ref_forward(x, w1, b1, w2, b2):
    """Pure-JAX reference with the same bf16-input / f32-accumulate math."""
    xb = x.astype(jnp.bfloat16).astype(jnp.float32)
    w1b = w1.T.astype(jnp.bfloat16).astype(jnp.float32)
    w2b = w2.T.astype(jnp.bfloat16).astype(jnp.float32)
    h = jnp.maximum(xb @ w1b + b1, 0.0)
    hb = h.astype(jnp.bfloat16).astype(jnp.float32)
    return hb @ w2b + b2


if __name__ == "__main__":
    key = jax.random.PRNGKey(0)
    kx, kp, kx2 = jax.random.split(key, 3)
    w1, b1, w2, b2 = init_params(kp)
    w1p, b1p, w2p, b2p = prepare_params(w1, b1, w2, b2)  # one-time prep

    # Small-batch case (grid = 1 tile).
    B = 4
    x = jax.random.normal(kx, (B, N_STATES), jnp.float32)
    out = jax.block_until_ready(net_forward(x, w1p, b1p, w2p, b2p))
    ref = _ref_forward(x, w1, b1, w2, b2)
    assert out.shape == (B, N_ACTIONS)
    assert jnp.allclose(out, ref, atol=2e-2, rtol=2e-2)

    # Larger batch exercises the tiled (multi-block, "parallel") path.
    B2 = 600
    x2 = jax.random.normal(kx2, (B2, N_STATES), jnp.float32)
    out2 = jax.block_until_ready(net_forward(x2, w1p, b1p, w2p, b2p))
    ref2 = _ref_forward(x2, w1, b1, w2, b2)
    assert out2.shape == (B2, N_ACTIONS)
    assert jnp.allclose(out2, ref2, atol=2e-2, rtol=2e-2)

    print("KERNEL_OK")
</pallas_src>

<mosaic_0001>
module attributes {stable_mosaic.version = 11 : i64} {
  func.func @_mlp_kernel(%arg0: i32, %arg1: memref<8x488xf32, #tpu.memory_space<vmem>>, %arg2: memref<512x128xbf16, #tpu.memory_space<vmem>>, %arg3: memref<1x128xf32, #tpu.memory_space<vmem>>, %arg4: memref<128x128xbf16, #tpu.memory_space<vmem>>, %arg5: memref<1x128xf32, #tpu.memory_space<vmem>>, %arg6: memref<8x128xf32, #tpu.memory_space<vmem>>, %arg7: memref<8x512xf32, #tpu.memory_space<vmem>>) attributes {dimension_semantics = [#tpu.dimension_semantics<parallel>], iteration_bounds = array<i64: 1>, scalar_prefetch = 0 : i64, scratch_operands = 1 : i64, tpu.core_type = #tpu.core_type<tc>, window_params = [{transform_indices = @transform_0, window_bounds = array<i64: 8, 488>}, {pipeline_mode = #tpu.pipeline_mode<synchronous>, transform_indices = @transform_1, window_bounds = array<i64: 512, 128>}, {pipeline_mode = #tpu.pipeline_mode<synchronous>, transform_indices = @transform_2, window_bounds = array<i64: 1, 128>}, {pipeline_mode = #tpu.pipeline_mode<synchronous>, transform_indices = @transform_3, window_bounds = array<i64: 128, 128>}, {pipeline_mode = #tpu.pipeline_mode<synchronous>, transform_indices = @transform_4, window_bounds = array<i64: 1, 128>}, {transform_indices = @transform_5, window_bounds = array<i64: 8, 128>}]} {
    %cst = arith.constant 0.000000e+00 : f32
    %0 = vector.broadcast %cst : f32 to vector<8x512xf32>
    %c0 = arith.constant 0 : index
    %c0_0 = arith.constant 0 : index
    %1 = vector.load %arg7[%c0, %c0_0] : memref<8x512xf32, #tpu.memory_space<vmem>>, vector<8x512xf32>
    tpu.vector_store %arg7[%c0, %c0_0], %0 {strides = array<i32>} : memref<8x512xf32, #tpu.memory_space<vmem>>, vector<8x512xf32>,
    %c0_1 = arith.constant 0 : index
    %c0_2 = arith.constant 0 : index
    %2 = vector.load %arg1[%c0_1, %c0_2] : memref<8x488xf32, #tpu.memory_space<vmem>>, vector<8x488xf32>
    %c0_3 = arith.constant 0 : index
    %c0_4 = arith.constant 0 : index
    %3 = vector.load %arg7[%c0_3, %c0_4] : memref<8x512xf32, #tpu.memory_space<vmem>>, vector<8x488xf32>
    tpu.vector_store %arg7[%c0_3, %c0_4], %2 {strides = array<i32>} : memref<8x512xf32, #tpu.memory_space<vmem>>, vector<8x488xf32>,
    %c0_5 = arith.constant 0 : index
    %c0_6 = arith.constant 0 : index
    %4 = vector.load %arg7[%c0_5, %c0_6] : memref<8x512xf32, #tpu.memory_space<vmem>>, vector<8x512xf32>
    %5 = arith.truncf %4 : vector<8x512xf32> to vector<8x512xbf16>
    %c0_7 = arith.constant 0 : index
    %c0_8 = arith.constant 0 : index
    %6 = vector.load %arg2[%c0_7, %c0_8] : memref<512x128xbf16, #tpu.memory_space<vmem>>, vector<512x128xbf16>
    %cst_9 = arith.constant dense<0.000000e+00> : vector<8x128xf32>
    %7 = tpu.matmul %5, %6, %cst_9 {dimension_numbers = #tpu.dot_dimension_numbers<[1], [0], [0], [1], [0, 0, 1, 1], [], []>} : vector<8x512xbf16>, vector<512x128xbf16>, vector<8x128xf32> -> vector<8x128xf32>
    %c0_10 = arith.constant 0 : index
    %c0_11 = arith.constant 0 : index
    %8 = vector.load %arg3[%c0_10, %c0_11] : memref<1x128xf32, #tpu.memory_space<vmem>>, vector<1x128xf32>
    %9 = vector.broadcast %8 : vector<1x128xf32> to vector<8x128xf32>
    %10 = arith.addf %7, %9 : vector<8x128xf32>
    %cst_12 = arith.constant 0.000000e+00 : f32
    %11 = vector.broadcast %cst_12 : f32 to vector<8x128xf32>
    %12 = arith.maximumf %10, %11 : vector<8x128xf32>
    %13 = arith.truncf %12 : vector<8x128xf32> to vector<8x128xbf16>
    %c0_13 = arith.constant 0 : index
    %c0_14 = arith.constant 0 : index
    %14 = vector.load %arg4[%c0_13, %c0_14] : memref<128x128xbf16, #tpu.memory_space<vmem>>, vector<128x128xbf16>
    %cst_15 = arith.constant dense<0.000000e+00> : vector<8x128xf32>
    %15 = tpu.matmul %13, %14, %cst_15 {dimension_numbers = #tpu.dot_dimension_numbers<[1], [0], [0], [1], [0, 0, 1, 1], [], []>} : vector<8x128xbf16>, vector<128x128xbf16>, vector<8x128xf32> -> vector<8x128xf32>
    %c0_16 = arith.constant 0 : index
    %c0_17 = arith.constant 0 : index
    %16 = vector.load %arg5[%c0_16, %c0_17] : memref<1x128xf32, #tpu.memory_space<vmem>>, vector<1x128xf32>
    %17 = vector.broadcast %16 : vector<1x128xf32> to vector<8x128xf32>
    %18 = arith.addf %15, %17 : vector<8x128xf32>
    %c0_18 = arith.constant 0 : index
    %c0_19 = arith.constant 0 : index
    %19 = vector.load %arg6[%c0_18, %c0_19] : memref<8x128xf32, #tpu.memory_space<vmem>>, vector<8x128xf32>
    tpu.vector_store %arg6[%c0_18, %c0_19], %18 {strides = array<i32>} : memref<8x128xf32, #tpu.memory_space<vmem>>, vector<8x128xf32>,
    return
  }
  func.func @transform_0(%arg0: i32) -> (i32, i32) {
    %c0_i32 = arith.constant 0 : i32
    %c0_i32_0 = arith.constant 0 : i32
    return %arg0, %c0_i32 : i32, i32
  }
  func.func @transform_1(%arg0: i32) -> (i32, i32) {
    %c0_i32 = arith.constant 0 : i32
    %c0_i32_0 = arith.constant 0 : i32
    %c0_i32_1 = arith.constant 0 : i32
    return %c0_i32, %c0_i32_0 : i32, i32
  }
  func.func @transform_2(%arg0: i32) -> (i32, i32) {
    %c0_i32 = arith.constant 0 : i32
    %c0_i32_0 = arith.constant 0 : i32
    %c0_i32_1 = arith.constant 0 : i32
    return %c0_i32, %c0_i32_0 : i32, i32
  }
  func.func @transform_3(%arg0: i32) -> (i32, i32) {
    %c0_i32 = arith.constant 0 : i32
    %c0_i32_0 = arith.constant 0 : i32
    %c0_i32_1 = arith.constant 0 : i32
    return %c0_i32, %c0_i32_0 : i32, i32
  }
  func.func @transform_4(%arg0: i32) -> (i32, i32) {
    %c0_i32 = arith.constant 0 : i32
    %c0_i32_0 = arith.constant 0 : i32
    %c0_i32_1 = arith.constant 0 : i32
    return %c0_i32, %c0_i32_0 : i32, i32
  }
  func.func @transform_5(%arg0: i32) -> (i32, i32) {
    %c0_i32 = arith.constant 0 : i32
    %c0_i32_0 = arith.constant 0 : i32
    return %arg0, %c0_i32 : i32, i32
  }
}

</mosaic_0001>

<llo_original>
// kernel: net_forward.1
$region0: #{net_forward.1}
  #allocation0 [shape = 'u32[]', space=smem, size = 0x4, offset = 0x4, fixed_abs, tag = 'smem constant byte address 0x4 - core index']
  #allocation1 [shape = 'u32[144,128]{1,0:T(1,128)}', space=vmem, size = 0x12000, scoped, tag = 'internal scratch']
  #allocation2 [shape = 'f32[8,512]{1,0:T(8,128)}', space=vmem, size = 0x4000, scoped, tag = 'scratch operand']
  %s0 = inlined_call_operand.vmem [shape: f32[8,488], index: 0, kind: input, shape index: {}]
  %s1 = inlined_call_operand.hbm [shape: bf16[512,128], index: 1, kind: input, shape index: {}]
  %s2 = inlined_call_operand.vmem [shape: f32[1,128], index: 2, kind: input, shape index: {}]
  %s3 = inlined_call_operand.hbm [shape: bf16[128,128], index: 3, kind: input, shape index: {}]
  %s4 = inlined_call_operand.vmem [shape: f32[1,128], index: 4, kind: input, shape index: {}]
  %s5 = inlined_call_operand.vmem [shape: f32[8,128], index: 5, kind: output, shape index: {}]
  %s6 = sld [smem:[#allocation0]]
  $region38: #{net_forward.1} parent=0
    _
  %s8 = ssub.s32 1, %s6
  %s9 = scalar_select 0, %s8, %s6
  $region1: #{net_forward.1} parent=0
    #allocation3 [shape = 'u8[131072]{0}', space=vmem, size = 0x20000, scoped, tag = 'input window, operand 1, single buffered']
    #allocation4 [shape = 's32[1]{0}', space=sflag, size = 0x4, scoped, tag = 'scoped memory for net_forward.1']
    #allocation5 [shape = 'u8[32768]{0}', space=vmem, size = 0x8000, scoped, tag = 'input window, operand 3, single buffered']
    #allocation6 [shape = 's32[1]{0}', space=sflag, size = 0x4, scoped, tag = 'scoped memory for net_forward.1']
    %10 = vsyncpa [#allocation4], 0
    %11 = vsyncpa [#allocation6], 0
    // Predicated region
    $region2: #{net_forward.1} parent=1 // pred_check
      _
    $region3: #{net_forward.1} parent=1 // pred_check_branch
      %13 = sbr.rel (0) target = $region5
    $region4: #{net_forward.1} parent=1 // pred_region
      _
    $region5: #{net_forward.1} parent=1 // pred_fallthru
      _
    // Predicated region
    $region6: #{net_forward.1} parent=1 // pred_check
      _
    $region7: #{net_forward.1} parent=1 // pred_check_branch
      %15 = sbr.rel (0) target = $region9
    $region8: #{net_forward.1} parent=1 // pred_region
      %s17 = ssub.s32 4096, 4096
      %18 = vsyncadd [#allocation4], %s17
      %s19 = sshll.u32 [#allocation3], 4
      %s20 = int_to_ptr.vmem [resolvable:$true] %s19
      %25 = dma.hbm_to_vmem [thread:$0]  %s1, 4096, %s20, [#allocation4], 64, 64, 4
    $region9: #{net_forward.1} parent=1 // pred_fallthru
      _
    // Predicated region
    $region10: #{net_forward.1} parent=1 // pred_check
      _
    $region11: #{net_forward.1} parent=1 // pred_check_branch
      %27 = sbr.rel (0) target = $region13
    $region12: #{net_forward.1} parent=1 // pred_region
      _
    $region13: #{net_forward.1} parent=1 // pred_fallthru
      _
    // Predicated region
    $region14: #{net_forward.1} parent=1 // pred_check
      _
    $region15: #{net_forward.1} parent=1 // pred_check_branch
      %29 = sbr.rel (0) target = $region17
    $region16: #{net_forward.1} parent=1 // pred_region
      %s31 = ssub.s32 1024, 1024
      %32 = vsyncadd [#allocation6], %s31
      %s33 = sshll.u32 [#allocation5], 4
      %s34 = int_to_ptr.vmem [resolvable:$true] %s33
      %39 = dma.hbm_to_vmem [thread:$0]  %s3, 1024, %s34, [#allocation6], 64, 64, 4
    $region17: #{net_forward.1} parent=1 // pred_fallthru
      _
    // Predicated region
    $region18: #{net_forward.1} parent=1 // pred_check
      _
    $region19: #{net_forward.1} parent=1 // pred_check_branch
      %41 = sbr.rel (0) target = $region21
    $region20: #{net_forward.1} parent=1 // pred_region
      _
    $region21: #{net_forward.1} parent=1 // pred_fallthru
      _
    // Predicated region
    $region22: #{net_forward.1} parent=1 // pred_check
      _
    $region23: #{net_forward.1} parent=1 // pred_check_branch
      %43 = sbr.rel (0) target = $region25
    $region24: #{net_forward.1} parent=1 // pred_region
      %44 = dma.done [#allocation4], 4096
    $region25: #{net_forward.1} parent=1 // pred_fallthru
      _
    // Predicated region
    $region26: #{net_forward.1} parent=1 // pred_check
      _
    $region27: #{net_forward.1} parent=1 // pred_check_branch
      %46 = sbr.rel (0) target = $region29
    $region28: #{net_forward.1} parent=1 // pred_region
      %47 = dma.done [#allocation6], 1024
    $region29: #{net_forward.1} parent=1 // pred_fallthru
      _
    %49 = vst [vmem:[#allocation2] sm:$0xff] 0.0
    %50 = vst [vmem:[#allocation2 + $0x8] sm:$0xff] 0.0
    %51 = vst [vmem:[#allocation2 + $0x10] sm:$0xff] 0.0
    %52 = vst [vmem:[#allocation2 + $0x18] sm:$0xff] 0.0
    %v53 = vld [vmem:[%s0] sm:$0xff]
    %v54 = vld [vmem:[%s0 + $0x8] sm:$0xff]
    %v55 = vld [vmem:[%s0 + $0x10] sm:$0xff]
    %v56 = vld [vmem:[%s0 + $0x18] sm:$0xff]
    %57 = vst [vmem:[#allocation2] sm:$0xff] %v53
    %58 = vst [vmem:[#allocation2 + $0x8] sm:$0xff] %v54
    %59 = vst [vmem:[#allocation2 + $0x10] sm:$0xff] %v55
    %vm60 = vcmask 850944
    %61 = vst.msk [vmem:[#allocation2 + $0x18] sm:$0xff] %vm60, %v56
    %v62 = vld [vmem:[#allocation2] sm:$0xff]
    %v63 = vld [vmem:[#allocation2 + $0x8] sm:$0xff]
    %v64 = vld [vmem:[#allocation2 + $0x10] sm:$0xff]
    %v65 = vld [vmem:[#allocation2 + $0x18] sm:$0xff]
    %v66 = vpack.c.bf16 %v62, %v62
    %v67 = vpack.c.bf16 %v63, %v63
    %v68 = vpack.c.bf16 %v64, %v64
    %v69 = vpack.c.bf16 %v65, %v65
    %v70 = vld [vmem:[#allocation3] sm:$0xf]
    %v71 = vld [vmem:[#allocation3 + $0x4] sm:$0xf]
    %v72 = vld [vmem:[#allocation3 + $0x8] sm:$0xf]
    %v73 = vld [vmem:[#allocation3 + $0xc] sm:$0xf]
    %v74 = vld [vmem:[#allocation3 + $0x10] sm:$0xf]
    %v75 = vld [vmem:[#allocation3 + $0x14] sm:$0xf]
    %v76 = vld [vmem:[#allocation3 + $0x18] sm:$0xf]
    %v77 = vld [vmem:[#allocation3 + $0x1c] sm:$0xf]
    %v78 = vld [vmem:[#allocation3 + $0x20] sm:$0xf]
    %v79 = vld [vmem:[#allocation3 + $0x24] sm:$0xf]
    %v80 = vld [vmem:[#allocation3 + $0x28] sm:$0xf]
    %v81 = vld [vmem:[#allocation3 + $0x2c] sm:$0xf]
    %v82 = vld [vmem:[#allocation3 + $0x30] sm:$0xf]
    %v83 = vld [vmem:[#allocation3 + $0x34] sm:$0xf]
    %v84 = vld [vmem:[#allocation3 + $0x38] sm:$0xf]
    %v85 = vld [vmem:[#allocation3 + $0x3c] sm:$0xf]
    %v86 = vld [vmem:[#allocation3 + $0x40] sm:$0xf]
    %v87 = vld [vmem:[#allocation3 + $0x44] sm:$0xf]
    %v88 = vld [vmem:[#allocation3 + $0x48] sm:$0xf]
    %v89 = vld [vmem:[#allocation3 + $0x4c] sm:$0xf]
    %v90 = vld [vmem:[#allocation3 + $0x50] sm:$0xf]
    %v91 = vld [vmem:[#allocation3 + $0x54] sm:$0xf]
    %v92 = vld [vmem:[#allocation3 + $0x58] sm:$0xf]
    %v93 = vld [vmem:[#allocation3 + $0x5c] sm:$0xf]
    %v94 = vld [vmem:[#allocation3 + $0x60] sm:$0xf]
    %v95 = vld [vmem:[#allocation3 + $0x64] sm:$0xf]
    %v96 = vld [vmem:[#allocation3 + $0x68] sm:$0xf]
    %v97 = vld [vmem:[#allocation3 + $0x6c] sm:$0xf]
    %v98 = vld [vmem:[#allocation3 + $0x70] sm:$0xf]
    %v99 = vld [vmem:[#allocation3 + $0x74] sm:$0xf]
    %v100 = vld [vmem:[#allocation3 + $0x78] sm:$0xf]
    %v101 = vld [vmem:[#allocation3 + $0x7c] sm:$0xf]
    %v102 = vld [vmem:[#allocation3 + $0x80] sm:$0xf]
    %v103 = vld [vmem:[#allocation3 + $0x84] sm:$0xf]
    %v104 = vld [vmem:[#allocation3 + $0x88] sm:$0xf]
    %v105 = vld [vmem:[#allocation3 + $0x8c] sm:$0xf]
    %v106 = vld [vmem:[#allocation3 + $0x90] sm:$0xf]
    %v107 = vld [vmem:[#allocation3 + $0x94] sm:$0xf]
    %v108 = vld [vmem:[#allocation3 + $0x98] sm:$0xf]
    %v109 = vld [vmem:[#allocation3 + $0x9c] sm:$0xf]
    %v110 = vld [vmem:[#allocation3 + $0xa0] sm:$0xf]
    %v111 = vld [vmem:[#allocation3 + $0xa4] sm:$0xf]
    %v112 = vld [vmem:[#allocation3 + $0xa8] sm:$0xf]
    %v113 = vld [vmem:[#allocation3 + $0xac] sm:$0xf]
    %v114 = vld [vmem:[#allocation3 + $0xb0] sm:$0xf]
    %v115 = vld [vmem:[#allocation3 + $0xb4] sm:$0xf]
    %v116 = vld [vmem:[#allocation3 + $0xb8] sm:$0xf]
    %v117 = vld [vmem:[#allocation3 + $0xbc] sm:$0xf]
    %v118 = vld [vmem:[#allocation3 + $0xc0] sm:$0xf]
    %v119 = vld [vmem:[#allocation3 + $0xc4] sm:$0xf]
    %v120 = vld [vmem:[#allocation3 + $0xc8] sm:$0xf]
    %v121 = vld [vmem:[#allocation3 + $0xcc] sm:$0xf]
    %v122 = vld [vmem:[#allocation3 + $0xd0] sm:$0xf]
    %v123 = vld [vmem:[#allocation3 + $0xd4] sm:$0xf]
    %v124 = vld [vmem:[#allocation3 + $0xd8] sm:$0xf]
    %v125 = vld [vmem:[#allocation3 + $0xdc] sm:$0xf]
    %v126 = vld [vmem:[#allocation3 + $0xe0] sm:$0xf]
    %v127 = vld [vmem:[#allocation3 + $0xe4] sm:$0xf]
    %v128 = vld [vmem:[#allocation3 + $0xe8] sm:$0xf]
    %v129 = vld [vmem:[#allocation3 + $0xec] sm:$0xf]
    %v130 = vld [vmem:[#allocation3 + $0xf0] sm:$0xf]
    %v131 = vld [vmem:[#allocation3 + $0xf4] sm:$0xf]
    %v132 = vld [vmem:[#allocation3 + $0xf8] sm:$0xf]
    %v133 = vld [vmem:[#allocation3 + $0xfc] sm:$0xf]
    %v134 = vld [vmem:[%s2] sm:$0x1]
    %v136 = vlaneseq
    %v137 = vshrl.u32 %v136, 7
    %v138 = vsub.s32 0, %v137
    %v139 = vrot.slane %v134, %v138
    %v205 = vunpack.c.l.b16 %v70
    %v206 = vunpack.c.l.b16 %v71
    %v207 = vunpack.c.l.b16 %v72
    %v208 = vunpack.c.l.b16 %v73
    %v209 = vunpack.c.l.b16 %v74
    %v210 = vunpack.c.l.b16 %v75
    %v211 = vunpack.c.l.b16 %v76
    %v212 = vunpack.c.l.b16 %v77
    %v213 = vunpack.c.l.b16 %v78
    %v214 = vunpack.c.l.b16 %v79
    %v215 = vunpack.c.l.b16 %v80
    %v216 = vunpack.c.l.b16 %v81
    %v217 = vunpack.c.l.b16 %v82
    %v218 = vunpack.c.l.b16 %v83
    %v219 = vunpack.c.l.b16 %v84
    %v220 = vunpack.c.l.b16 %v85
    %v221 = vunpack.c.l.b16 %v86
    %v222 = vunpack.c.l.b16 %v87
    %v223 = vunpack.c.l.b16 %v88
    %v224 = vunpack.c.l.b16 %v89
    %v225 = vunpack.c.l.b16 %v90
    %v226 = vunpack.c.l.b16 %v91
    %v227 = vunpack.c.l.b16 %v92
    %v228 = vunpack.c.l.b16 %v93
    %v229 = vunpack.c.l.b16 %v94
    %v230 = vunpack.c.l.b16 %v95
    %v231 = vunpack.c.l.b16 %v96
    %v232 = vunpack.c.l.b16 %v97
    %v233 = vunpack.c.l.b16 %v98
    %v234 = vunpack.c.l.b16 %v99
    %v235 = vunpack.c.l.b16 %v100
    %v236 = vunpack.c.l.b16 %v101
    %v237 = vunpack.c.l.b16 %v102
    %v238 = vunpack.c.l.b16 %v103
    %v239 = vunpack.c.l.b16 %v104
    %v240 = vunpack.c.l.b16 %v105
    %v241 = vunpack.c.l.b16 %v106
    %v242 = vunpack.c.l.b16 %v107
    %v243 = vunpack.c.l.b16 %v108
    %v244 = vunpack.c.l.b16 %v109
    %v245 = vunpack.c.l.b16 %v110
    %v246 = vunpack.c.l.b16 %v111
    %v247 = vunpack.c.l.b16 %v112
    %v248 = vunpack.c.l.b16 %v113
    %v249 = vunpack.c.l.b16 %v114
    %v250 = vunpack.c.l.b16 %v115
    %v251 = vunpack.c.l.b16 %v116
    %v252 = vunpack.c.l.b16 %v117
    %v253 = vunpack.c.l.b16 %v118
    %v254 = vunpack.c.l.b16 %v119
    %v255 = vunpack.c.l.b16 %v120
    %v256 = vunpack.c.l.b16 %v121
    %v257 = vunpack.c.l.b16 %v122
    %v258 = vunpack.c.l.b16 %v123
    %v259 = vunpack.c.l.b16 %v124
    %v260 = vunpack.c.l.b16 %v125
    %v261 = vunpack.c.l.b16 %v126
    %v262 = vunpack.c.l.b16 %v127
    %v263 = vunpack.c.l.b16 %v128
    %v264 = vunpack.c.l.b16 %v129
    %v265 = vunpack.c.l.b16 %v130
    %v266 = vunpack.c.l.b16 %v131
    %v267 = vunpack.c.l.b16 %v132
    %v268 = vunpack.c.l.b16 %v133
    %v269 = vpack.c.b16 %v206, %v205
    %v270 = vpack.c.b16 %v208, %v207
    %v271 = vpack.c.b16 %v210, %v209
    %v272 = vpack.c.b16 %v212, %v211
    %v273 = vpack.c.b16 %v214, %v213
    %v274 = vpack.c.b16 %v216, %v215
    %v275 = vpack.c.b16 %v218, %v217
    %v276 = vpack.c.b16 %v220, %v219
    %v277 = vpack.c.b16 %v222, %v221
    %v278 = vpack.c.b16 %v224, %v223
    %v279 = vpack.c.b16 %v226, %v225
    %v280 = vpack.c.b16 %v228, %v227
    %v281 = vpack.c.b16 %v230, %v229
    %v282 = vpack.c.b16 %v232, %v231
    %v283 = vpack.c.b16 %v234, %v233
    %v284 = vpack.c.b16 %v236, %v235
    %v285 = vpack.c.b16 %v238, %v237
    %v286 = vpack.c.b16 %v240, %v239
    %v287 = vpack.c.b16 %v242, %v241
    %v288 = vpack.c.b16 %v244, %v243
    %v289 = vpack.c.b16 %v246, %v245
    %v290 = vpack.c.b16 %v248, %v247
    %v291 = vpack.c.b16 %v250, %v249
    %v292 = vpack.c.b16 %v252, %v251
    %v293 = vpack.c.b16 %v254, %v253
    %v294 = vpack.c.b16 %v256, %v255
    %v295 = vpack.c.b16 %v258, %v257
    %v296 = vpack.c.b16 %v260, %v259
    %v297 = vpack.c.b16 %v262, %v261
    %v298 = vpack.c.b16 %v264, %v263
    %v299 = vpack.c.b16 %v266, %v265
    %v300 = vpack.c.b16 %v268, %v267
    %333 = vmatprep.subr.bf16.mxu0 0
    %334 = vmatpush1.bf16.msra.mxu0 %v269
    %335 = vmatprep.subr.bf16.mxu0 0
    %336 = vmatpush1.bf16.msra.mxu0 %v270
    %337 = vmatprep.subr.bf16.mxu0 0
    %338 = vmatpush1.bf16.msra.mxu0 %v271
    %339 = vmatprep.subr.bf16.mxu0 0
    %340 = vmatpush1.bf16.msra.mxu0 %v272
    %341 = vmatprep.subr.bf16.mxu0 0
    %342 = vmatpush1.bf16.msra.mxu0 %v273
    %343 = vmatprep.subr.bf16.mxu0 0
    %344 = vmatpush1.bf16.msra.mxu0 %v274
    %345 = vmatprep.subr.bf16.mxu0 0
    %346 = vmatpush1.bf16.msra.mxu0 %v275
    %347 = vmatprep.subr.bf16.mxu0 0
    %348 = vmatpush1.bf16.msra.mxu0 %v276
    %349 = vmatprep.subr.bf16.mxu0 0
    %350 = vmatpush1.bf16.msra.mxu0 %v277
    %351 = vmatprep.subr.bf16.mxu0 0
    %352 = vmatpush1.bf16.msra.mxu0 %v278
    %353 = vmatprep.subr.bf16.mxu0 0
    %354 = vmatpush1.bf16.msra.mxu0 %v279
    %355 = vmatprep.subr.bf16.mxu0 0
    %356 = vmatpush1.bf16.msra.mxu0 %v280
    %357 = vmatprep.subr.bf16.mxu0 0
    %358 = vmatpush1.bf16.msra.mxu0 %v281
    %359 = vmatprep.subr.bf16.mxu0 0
    %360 = vmatpush1.bf16.msra.mxu0 %v282
    %361 = vmatprep.subr.bf16.mxu0 0
    %362 = vmatpush1.bf16.msra.mxu0 %v283
    %363 = vmatprep.subr.bf16.mxu0 0
    %364 = vmatpush1.bf16.msra.mxu0 %v284
    %365 = vmatprep.mubr.bf16.mxu0 %v67
    %366 = vmatmul.mubr.bf16.gmra.mrb[0].mxu0 %v66
    %v367 = vpop.f32.mrb[0].mxu0
    %v368 = vadd.f32 %v139, %v367
    %v369 = vpop.f32.mrb[0].mxu0
    %v370 = vpop.f32.mrb[0].mxu0
    %v371 = vpop.f32.mrb[0].mxu0
    %372 = vdwg.mxu0
    %373 = vmatprep.subr.bf16.mxu0 0
    %374 = vmatpush1.bf16.msra.mxu0 %v285
    %375 = vmatprep.subr.bf16.mxu0 0
    %376 = vmatpush1.bf16.msra.mxu0 %v286
    %377 = vmatprep.subr.bf16.mxu0 0
    %378 = vmatpush1.bf16.msra.mxu0 %v287
    %379 = vmatprep.subr.bf16.mxu0 0
    %380 = vmatpush1.bf16.msra.mxu0 %v288
    %381 = vmatprep.subr.bf16.mxu0 0
    %382 = vmatpush1.bf16.msra.mxu0 %v289
    %383 = vmatprep.subr.bf16.mxu0 0
    %384 = vmatpush1.bf16.msra.mxu0 %v290
    %385 = vmatprep.subr.bf16.mxu0 0
    %386 = vmatpush1.bf16.msra.mxu0 %v291
    %387 = vmatprep.subr.bf16.mxu0 0
    %388 = vmatpush1.bf16.msra.mxu0 %v292
    %389 = vmatprep.subr.bf16.mxu0 0
    %390 = vmatpush1.bf16.msra.mxu0 %v293
    %391 = vmatprep.subr.bf16.mxu0 0
    %392 = vmatpush1.bf16.msra.mxu0 %v294
    %393 = vmatprep.subr.bf16.mxu0 0
    %394 = vmatpush1.bf16.msra.mxu0 %v295
    %395 = vmatprep.subr.bf16.mxu0 0
    %396 = vmatpush1.bf16.msra.mxu0 %v296
    %397 = vmatprep.subr.bf16.mxu0 0
    %398 = vmatpush1.bf16.msra.mxu0 %v297
    %399 = vmatprep.subr.bf16.mxu0 0
    %400 = vmatpush1.bf16.msra.mxu0 %v298
    %401 = vmatprep.subr.bf16.mxu0 0
    %402 = vmatpush1.bf16.msra.mxu0 %v299
    %403 = vmatprep.subr.bf16.mxu0 0
    %404 = vmatpush1.bf16.msra.mxu0 %v300
    %405 = vmatprep.mubr.bf16.mxu0 %v69
    %406 = vmatmul.mubr.bf16.gmra.mrb[0].mxu0 %v68
    %v407 = vpop.f32.mrb[0].mxu0
    %v408 = vadd.f32 %v368, %v407
    %v409 = vpop.f32.mrb[0].mxu0
    %v410 = vpop.f32.mrb[0].mxu0
    %v411 = vpop.f32.mrb[0].mxu0
    %412 = vdwg.mxu0
    %v413 = vmax.f32 %v408, 0.0
    %v414 = vpack.c.bf16 %v413, %v413
    %v415 = vld [vmem:[#allocation5] sm:$0xf]
    %v416 = vld [vmem:[#allocation5 + $0x4] sm:$0xf]
    %v417 = vld [vmem:[#allocation5 + $0x8] sm:$0xf]
    %v418 = vld [vmem:[#allocation5 + $0xc] sm:$0xf]
    %v419 = vld [vmem:[#allocation5 + $0x10] sm:$0xf]
    %v420 = vld [vmem:[#allocation5 + $0x14] sm:$0xf]
    %v421 = vld [vmem:[#allocation5 + $0x18] sm:$0xf]
    %v422 = vld [vmem:[#allocation5 + $0x1c] sm:$0xf]
    %v423 = vld [vmem:[#allocation5 + $0x20] sm:$0xf]
    %v424 = vld [vmem:[#allocation5 + $0x24] sm:$0xf]
    %v425 = vld [vmem:[#allocation5 + $0x28] sm:$0xf]
    %v426 = vld [vmem:[#allocation5 + $0x2c] sm:$0xf]
    %v427 = vld [vmem:[#allocation5 + $0x30] sm:$0xf]
    %v428 = vld [vmem:[#allocation5 + $0x34] sm:$0xf]
    %v429 = vld [vmem:[#allocation5 + $0x38] sm:$0xf]
    %v430 = vld [vmem:[#allocation5 + $0x3c] sm:$0xf]
    %v431 = vld [vmem:[%s4] sm:$0x1]
    %v433 = vlaneseq
    %v434 = vshrl.u32 %v433, 7
    %v435 = vsub.s32 0, %v434
    %v436 = vrot.slane %v431, %v435
    %v454 = vunpack.c.l.b16 %v415
    %v455 = vunpack.c.l.b16 %v416
    %v456 = vunpack.c.l.b16 %v417
    %v457 = vunpack.c.l.b16 %v418
    %v458 = vunpack.c.l.b16 %v419
    %v459 = vunpack.c.l.b16 %v420
    %v460 = vunpack.c.l.b16 %v421
    %v461 = vunpack.c.l.b16 %v422
    %v462 = vunpack.c.l.b16 %v423
    %v463 = vunpack.c.l.b16 %v424
    %v464 = vunpack.c.l.b16 %v425
    %v465 = vunpack.c.l.b16 %v426
    %v466 = vunpack.c.l.b16 %v427
    %v467 = vunpack.c.l.b16 %v428
    %v468 = vunpack.c.l.b16 %v429
    %v469 = vunpack.c.l.b16 %v430
    %v470 = vpack.c.b16 %v455, %v454
    %v471 = vpack.c.b16 %v457, %v456
    %v472 = vpack.c.b16 %v459, %v458
    %v473 = vpack.c.b16 %v461, %v460
    %v474 = vpack.c.b16 %v463, %v462
    %v475 = vpack.c.b16 %v465, %v464
    %v476 = vpack.c.b16 %v467, %v466
    %v477 = vpack.c.b16 %v469, %v468
    %486 = vmatprep.subr.bf16.mxu0 0
    %487 = vmatpush1.bf16.msra.mxu0 %v470
    %488 = vmatprep.subr.bf16.mxu0 0
    %489 = vmatpush1.bf16.msra.mxu0 %v471
    %490 = vmatprep.subr.bf16.mxu0 0
    %491 = vmatpush1.bf16.msra.mxu0 %v472
    %492 = vmatprep.subr.bf16.mxu0 0
    %493 = vmatpush1.bf16.msra.mxu0 %v473
    %494 = vmatprep.subr.bf16.mxu0 0
    %495 = vmatpush1.bf16.msra.mxu0 %v474
    %496 = vmatprep.subr.bf16.mxu0 0
    %497 = vmatpush1.bf16.msra.mxu0 %v475
    %498 = vmatprep.subr.bf16.mxu0 0
    %499 = vmatpush1.bf16.msra.mxu0 %v476
    %500 = vmatprep.subr.bf16.mxu0 0
    %501 = vmatpush1.bf16.msra.mxu0 %v477
    %502 = vmatprep.subr.bf16.mxu0 0
    %503 = vmatpush1.bf16.msra.mxu0 0
    %504 = vmatprep.subr.bf16.mxu0 0
    %505 = vmatpush1.bf16.msra.mxu0 0
    %506 = vmatprep.subr.bf16.mxu0 0
    %507 = vmatpush1.bf16.msra.mxu0 0
    %508 = vmatprep.subr.bf16.mxu0 0
    %509 = vmatpush1.bf16.msra.mxu0 0
    %510 = vmatprep.subr.bf16.mxu0 0
    %511 = vmatpush1.bf16.msra.mxu0 0
    %512 = vmatprep.subr.bf16.mxu0 0
    %513 = vmatpush1.bf16.msra.mxu0 0
    %514 = vmatprep.subr.bf16.mxu0 0
    %515 = vmatpush1.bf16.msra.mxu0 0
    %516 = vmatprep.subr.bf16.mxu0 0
    %517 = vmatpush1.bf16.msra.mxu0 0
    %518 = vmatprep.mubr.bf16.mxu0 0
    %519 = vmatmul.mubr.bf16.gmra.mrb[0].mxu0 %v414
    %v520 = vpop.f32.mrb[0].mxu0
    %v521 = vadd.f32 %v436, %v520
    %v522 = vpop.f32.mrb[0].mxu0
    %v523 = vpop.f32.mrb[0].mxu0
    %v524 = vpop.f32.mrb[0].mxu0
    %525 = vdwg.mxu0
    %526 = vst [vmem:[%s5] sm:$0xff] %v521
    // Predicated region
    $region30: #{net_forward.1} parent=1 // pred_check
      _
    $region31: #{net_forward.1} parent=1 // pred_check_branch
      %528 = sbr.rel (0) target = $region33
    $region32: #{net_forward.1} parent=1 // pred_region
      _
    $region33: #{net_forward.1} parent=1 // pred_fallthru
      _
    // Predicated region
    $region34: #{net_forward.1} parent=1 // pred_check
      _
    $region35: #{net_forward.1} parent=1 // pred_check_branch
      %530 = sbr.rel (0) target = $region37
    $region36: #{net_forward.1} parent=1 // pred_region
      _
    $region37: #{net_forward.1} parent=1 // pred_fallthru
      _
    %531 = vsyncpa [#allocation4], 1
    %532 = vsyncpa [#allocation6], 1

</llo_original>
